<compile_context>
chip_gen: v5e
topology: v5e:2x2
jax: 0.10.0
libtpu: 0.0.40
codegen_flags: <defaults>
</compile_context>

<pallas_src>
import jax
import jax.numpy as jnp
from jax.experimental import pallas as pl
from jax.experimental.pallas import tpu as pltpu


def critic_kernel(xt_ref, w1_ref, b1_ref, w2_ref, b2_ref, w3_ref, b3_ref, o_ref):
    """One batch tile (batch along lanes) of the fused critic MLP.

    xt_ref: (F, TB)  f32   x^T tile (batch along lanes)
    w1_ref: (H, F)   f32   PyTorch (out, in) layout; layer 1 runs on the VPU in f32
    b1_ref: (H, 1)   f32
    w2_ref: (H, H)   bf16  PyTorch (out, in) layout; the only MXU matmul
    b2_ref: (H, 1)   f32
    w3_ref: (H, 1)   f32   final Linear(H -> 1) as VPU mul + sublane reduction
    b3_ref: (1,)     f32   scalar bias in SMEM
    o_ref : (1, TB)  f32   compact lane-dense row of critic values
    """
    F = xt_ref.shape[0]
    xt = xt_ref[...]                                     # (F, TB) f32
    w1 = w1_ref[...]                                     # (H, F)  f32

    # Layer 1: K = F is tiny (4 for CartPole) -> F unrolled VPU FMAs instead of a
    # degenerate MXU matmul; stays in f32.
    acc = w1[:, 0:1] * xt[0:1, :]                        # (H, TB)
    for k in range(1, F):
        acc = acc + w1[:, k:k + 1] * xt[k:k + 1, :]
    h1 = jnp.maximum(acc + b1_ref[...], 0.0)             # (H, TB) f32

    # Layer 2: the only well-shaped matmul -> MXU, bf16 operands, f32 accumulation.
    # (At H=128 this uses 128 of the 256x256 MXU on v6e/v7x; native tile on v5e --
    #  the kernel is latency/DMA-bound at these sizes, which is expected.)
    h2 = jnp.dot(w2_ref[...], h1.astype(jnp.bfloat16),
                 preferred_element_type=jnp.float32)
    h2 = jnp.maximum(h2 + b2_ref[...], 0.0)              # (H, TB) f32

    # Layer 3: Linear(H -> 1) on the VPU/XLU (an N=1 matmul would waste the MXU).
    val = jnp.sum(h2 * w3_ref[...], axis=0, keepdims=True) + b3_ref[0]   # (1, TB)
    o_ref[...] = val


def prepare_critic_params(params):
    """One-time conversion of fp32 PyTorch-layout params into the kernel layout.

    Hoists the per-call bf16 cast of W2 and the bias / W3 reshapes out of the RL
    rollout loop: call this once and reuse the result for every critic_forward call.
    """
    H = params["W1"].shape[0]
    return {
        "W1": params["W1"].astype(jnp.float32),                 # (H, F)  f32 (VPU layer)
        "b1": params["b1"].reshape(H, 1).astype(jnp.float32),   # (H, 1)
        "W2": params["W2"].astype(jnp.bfloat16),                # (H, H)  bf16 (MXU layer)
        "b2": params["b2"].reshape(H, 1).astype(jnp.float32),   # (H, 1)
        "W3": params["W3"].reshape(H, 1).astype(jnp.float32),   # (H, 1)
        "b3": params["b3"].reshape(1).astype(jnp.float32),      # (1,)   SMEM scalar
    }


def _round_up(a, m):
    return ((a + m - 1) // m) * m


@jax.jit
def critic_forward(x, kp):
    """x: (B, num_inputs) f32. kp: output of prepare_critic_params. Returns (B, 1) f32."""
    B, F = x.shape
    H = kp["W1"].shape[0]

    # Batch tile (lane dim): always a multiple of 128 (so the (1, TB) store is
    # lane-dense and bf16 packing constraints are trivially met since H=multiple of
    # 16 sits on sublanes). Once the batch is big enough, keep >=2 grid steps so the
    # "parallel" axis can shard across both v7x TensorCores, and grow the tile to
    # 256/512 to amortize the ~0.35 us/step pipeline overhead.
    n128 = _round_up(B, 128) // 128
    if n128 <= 7:
        TB = 128
    elif n128 <= 15:
        TB = 256
    else:
        TB = 512
    B_pad = _round_up(B, TB)
    grid = (B_pad // TB,)

    # Batch-in-lanes layout: pad + transpose so each grid step emits a compact
    # lane-dense (1, TB) output row (4 B of HBM writeback per batch element).
    x_t = jnp.pad(x, ((0, B_pad - B), (0, 0))).T          # (F, B_pad)

    flops = 2 * B_pad * (F * H + H * H + H) + 4 * B_pad * H
    bytes_accessed = (B_pad * F * 4                        # x
                      + H * F * 4 + H * H * 2              # W1 (f32), W2 (bf16)
                      + 3 * H * 4 + 4                      # b1, b2, W3, b3
                      + B_pad * 4)                         # compact output

    out = pl.pallas_call(
        critic_kernel,
        out_shape=jax.ShapeDtypeStruct((1, B_pad), jnp.float32),
        grid=grid,
        in_specs=[
            pl.BlockSpec((F, TB), lambda i: (0, i)),             # x^T batch tile
            pl.BlockSpec((H, F), lambda i: (0, 0)),              # W1 resident
            pl.BlockSpec((H, 1), lambda i: (0, 0)),              # b1
            pl.BlockSpec((H, H), lambda i: (0, 0)),              # W2 resident (bf16)
            pl.BlockSpec((H, 1), lambda i: (0, 0)),              # b2
            pl.BlockSpec((H, 1), lambda i: (0, 0)),              # W3 column
            pl.BlockSpec(memory_space=pltpu.MemorySpace.SMEM),   # b3 scalar in SMEM
        ],
        out_specs=pl.BlockSpec((1, TB), lambda i: (0, i)),
        compiler_params=pltpu.CompilerParams(
            dimension_semantics=("parallel",),
            vmem_limit_bytes=32 * 1024 * 1024,   # consistent with v7x scoped ceiling
        ),
        cost_estimate=pl.CostEstimate(
            flops=flops, transcendentals=0, bytes_accessed=bytes_accessed),
    )(x_t, kp["W1"], kp["b1"], kp["W2"], kp["b2"], kp["W3"], kp["b3"])

    # TODO(synk): if H ever grows so that W2 (H*H bf16, double-buffered by the default
    # pipeline) approaches the v7x VMEM budget (64 MiB physical / 32 MiB scoped),
    # single-buffer the grid-invariant weights (pipeline_mode=pl.Buffered(1)) and tile
    # W2 over an extra "arbitrary" reduction grid axis.
    return out[0, :B].reshape(B, 1)


def init_critic_params(key, num_inputs, hidden_size, up_factor):
    """fp32 params in PyTorch nn.Linear layout (weight: (out, in)), default-style init."""
    H = hidden_size * up_factor
    ks = jax.random.split(key, 6)

    def lin(kw, kb, fan_in, fan_out):
        bound = 1.0 / float(fan_in) ** 0.5
        W = jax.random.uniform(kw, (fan_out, fan_in), jnp.float32, -bound, bound)
        b = jax.random.uniform(kb, (fan_out,), jnp.float32, -bound, bound)
        return W, b

    W1, b1 = lin(ks[0], ks[1], num_inputs, H)
    W2, b2 = lin(ks[2], ks[3], H, H)
    W3, b3 = lin(ks[4], ks[5], H, 1)
    return {"W1": W1, "b1": b1, "W2": W2, "b2": b2, "W3": W3, "b3": b3}


if __name__ == "__main__":
    # CartPole-v0: observation dim = 4; hidden_size=64 * up_factor=2 -> H=128; num_envs=2.
    batch, num_inputs, hidden_size, up_factor = 2, 4, 64, 2

    key = jax.random.PRNGKey(0)
    kx, kp_key = jax.random.split(key)
    x = jax.random.normal(kx, (batch, num_inputs), dtype=jnp.float32)
    params = init_critic_params(kp_key, num_inputs, hidden_size, up_factor)
    kparams = prepare_critic_params(params)   # one-time layout / dtype conversion

    out = jax.block_until_ready(critic_forward(x, kparams))

    # Reference mirroring the kernel's precision contract (layer 2: bf16 operands,
    # f32 accumulation; layers 1 and 3 in f32), in PyTorch y = x @ W^T + b convention.
    def ref(xv, p):
        h1 = jnp.maximum(xv @ p["W1"].T + p["b1"], 0.0)
        h2 = jnp.dot(h1.astype(jnp.bfloat16), p["W2"].T.astype(jnp.bfloat16),
                     preferred_element_type=jnp.float32) + p["b2"]
        h2 = jnp.maximum(h2, 0.0)
        return h2 @ p["W3"].T + p["b3"]

    expected = ref(x, params)
    assert out.shape == (batch, 1), out.shape
    assert jnp.allclose(out, expected, atol=2e-3, rtol=2e-3), (out, expected)
    print("KERNEL_OK")
</pallas_src>

<mosaic_0001>
module attributes {stable_mosaic.version = 11 : i64} {
  func.func @critic_kernel(%arg0: i32, %arg1: memref<4x128xf32, #tpu.memory_space<vmem>>, %arg2: memref<128x4xf32, #tpu.memory_space<vmem>>, %arg3: memref<128x1xf32, #tpu.memory_space<vmem>>, %arg4: memref<128x128xbf16, #tpu.memory_space<vmem>>, %arg5: memref<128x1xf32, #tpu.memory_space<vmem>>, %arg6: memref<128x1xf32, #tpu.memory_space<vmem>>, %arg7: memref<1xf32, #tpu.memory_space<smem>>, %arg8: memref<1x128xf32, #tpu.memory_space<vmem>>) attributes {dimension_semantics = [#tpu.dimension_semantics<parallel>], iteration_bounds = array<i64: 1>, scalar_prefetch = 0 : i64, scratch_operands = 0 : i64, tpu.core_type = #tpu.core_type<tc>, window_params = [{transform_indices = @transform_0, window_bounds = array<i64: 4, 128>}, {pipeline_mode = #tpu.pipeline_mode<synchronous>, transform_indices = @transform_1, window_bounds = array<i64: 128, 4>}, {pipeline_mode = #tpu.pipeline_mode<synchronous>, transform_indices = @transform_2, window_bounds = array<i64: 128, 1>}, {pipeline_mode = #tpu.pipeline_mode<synchronous>, transform_indices = @transform_3, window_bounds = array<i64: 128, 128>}, {pipeline_mode = #tpu.pipeline_mode<synchronous>, transform_indices = @transform_4, window_bounds = array<i64: 128, 1>}, {pipeline_mode = #tpu.pipeline_mode<synchronous>, transform_indices = @transform_5, window_bounds = array<i64: 128, 1>}, {transform_indices = @transform_6, window_bounds = array<i64: 1>}, {transform_indices = @transform_7, window_bounds = array<i64: 1, 128>}]} {
    %c0 = arith.constant 0 : index
    %c0_0 = arith.constant 0 : index
    %0 = vector.load %arg1[%c0, %c0_0] : memref<4x128xf32, #tpu.memory_space<vmem>>, vector<4x128xf32>
    %c0_1 = arith.constant 0 : index
    %c0_2 = arith.constant 0 : index
    %1 = vector.load %arg2[%c0_1, %c0_2] : memref<128x4xf32, #tpu.memory_space<vmem>>, vector<128x4xf32>
    %2 = vector.extract_strided_slice %1 {offsets = [0, 0], sizes = [128, 1], strides = [1, 1]} : vector<128x4xf32> to vector<128x1xf32>
    %3 = vector.extract_strided_slice %0 {offsets = [0, 0], sizes = [1, 128], strides = [1, 1]} : vector<4x128xf32> to vector<1x128xf32>
    %4 = vector.broadcast %2 : vector<128x1xf32> to vector<128x128xf32>
    %5 = vector.broadcast %3 : vector<1x128xf32> to vector<128x128xf32>
    %6 = arith.mulf %4, %5 : vector<128x128xf32>
    %7 = vector.extract_strided_slice %1 {offsets = [0, 1], sizes = [128, 1], strides = [1, 1]} : vector<128x4xf32> to vector<128x1xf32>
    %8 = vector.extract_strided_slice %0 {offsets = [1, 0], sizes = [1, 128], strides = [1, 1]} : vector<4x128xf32> to vector<1x128xf32>
    %9 = vector.broadcast %7 : vector<128x1xf32> to vector<128x128xf32>
    %10 = vector.broadcast %8 : vector<1x128xf32> to vector<128x128xf32>
    %11 = arith.mulf %9, %10 : vector<128x128xf32>
    %12 = arith.addf %6, %11 : vector<128x128xf32>
    %13 = vector.extract_strided_slice %1 {offsets = [0, 2], sizes = [128, 1], strides = [1, 1]} : vector<128x4xf32> to vector<128x1xf32>
    %14 = vector.extract_strided_slice %0 {offsets = [2, 0], sizes = [1, 128], strides = [1, 1]} : vector<4x128xf32> to vector<1x128xf32>
    %15 = vector.broadcast %13 : vector<128x1xf32> to vector<128x128xf32>
    %16 = vector.broadcast %14 : vector<1x128xf32> to vector<128x128xf32>
    %17 = arith.mulf %15, %16 : vector<128x128xf32>
    %18 = arith.addf %12, %17 : vector<128x128xf32>
    %19 = vector.extract_strided_slice %1 {offsets = [0, 3], sizes = [128, 1], strides = [1, 1]} : vector<128x4xf32> to vector<128x1xf32>
    %20 = vector.extract_strided_slice %0 {offsets = [3, 0], sizes = [1, 128], strides = [1, 1]} : vector<4x128xf32> to vector<1x128xf32>
    %21 = vector.broadcast %19 : vector<128x1xf32> to vector<128x128xf32>
    %22 = vector.broadcast %20 : vector<1x128xf32> to vector<128x128xf32>
    %23 = arith.mulf %21, %22 : vector<128x128xf32>
    %24 = arith.addf %18, %23 : vector<128x128xf32>
    %c0_3 = arith.constant 0 : index
    %c0_4 = arith.constant 0 : index
    %25 = vector.load %arg3[%c0_3, %c0_4] : memref<128x1xf32, #tpu.memory_space<vmem>>, vector<128x1xf32>
    %26 = vector.broadcast %25 : vector<128x1xf32> to vector<128x128xf32>
    %27 = arith.addf %24, %26 : vector<128x128xf32>
    %cst = arith.constant 0.000000e+00 : f32
    %28 = vector.broadcast %cst : f32 to vector<128x128xf32>
    %29 = arith.maximumf %27, %28 : vector<128x128xf32>
    %c0_5 = arith.constant 0 : index
    %c0_6 = arith.constant 0 : index
    %30 = vector.load %arg4[%c0_5, %c0_6] : memref<128x128xbf16, #tpu.memory_space<vmem>>, vector<128x128xbf16>
    %31 = arith.truncf %29 : vector<128x128xf32> to vector<128x128xbf16>
    %cst_7 = arith.constant dense<0.000000e+00> : vector<128x128xf32>
    %32 = tpu.matmul %30, %31, %cst_7 {dimension_numbers = #tpu.dot_dimension_numbers<[1], [0], [0], [1], [0, 0, 1, 1], [], []>} : vector<128x128xbf16>, vector<128x128xbf16>, vector<128x128xf32> -> vector<128x128xf32>
    %c0_8 = arith.constant 0 : index
    %c0_9 = arith.constant 0 : index
    %33 = vector.load %arg5[%c0_8, %c0_9] : memref<128x1xf32, #tpu.memory_space<vmem>>, vector<128x1xf32>
    %34 = vector.broadcast %33 : vector<128x1xf32> to vector<128x128xf32>
    %35 = arith.addf %32, %34 : vector<128x128xf32>
    %cst_10 = arith.constant 0.000000e+00 : f32
    %36 = vector.broadcast %cst_10 : f32 to vector<128x128xf32>
    %37 = arith.maximumf %35, %36 : vector<128x128xf32>
    %c0_11 = arith.constant 0 : index
    %c0_12 = arith.constant 0 : index
    %38 = vector.load %arg6[%c0_11, %c0_12] : memref<128x1xf32, #tpu.memory_space<vmem>>, vector<128x1xf32>
    %39 = vector.broadcast %38 : vector<128x1xf32> to vector<128x128xf32>
    %40 = arith.mulf %37, %39 : vector<128x128xf32>
    %cst_13 = arith.constant dense<0.000000e+00> : vector<128xf32>
    %41 = vector.multi_reduction <add>, %40, %cst_13 [0] : vector<128x128xf32> to vector<128xf32>
    %42 = vector.shape_cast %41 : vector<128xf32> to vector<1x128xf32>
    %c0_14 = arith.constant 0 : index
    %43 = memref.load %arg7[%c0_14] : memref<1xf32, #tpu.memory_space<smem>>
    %44 = vector.broadcast %43 : f32 to vector<1x128xf32>
    %45 = arith.addf %42, %44 : vector<1x128xf32>
    %c0_15 = arith.constant 0 : index
    %c0_16 = arith.constant 0 : index
    %46 = vector.load %arg8[%c0_15, %c0_16] : memref<1x128xf32, #tpu.memory_space<vmem>>, vector<1x128xf32>
    tpu.vector_store %arg8[%c0_15, %c0_16], %45 {strides = array<i32>} : memref<1x128xf32, #tpu.memory_space<vmem>>, vector<1x128xf32>,
    return
  }
  func.func @transform_0(%arg0: i32) -> (i32, i32) {
    %c0_i32 = arith.constant 0 : i32
    %c0_i32_0 = arith.constant 0 : i32
    return %c0_i32, %arg0 : i32, i32
  }
  func.func @transform_1(%arg0: i32) -> (i32, i32) {
    %c0_i32 = arith.constant 0 : i32
    %c0_i32_0 = arith.constant 0 : i32
    %c0_i32_1 = arith.constant 0 : i32
    return %c0_i32, %c0_i32_0 : i32, i32
  }
  func.func @transform_2(%arg0: i32) -> (i32, i32) {
    %c0_i32 = arith.constant 0 : i32
    %c0_i32_0 = arith.constant 0 : i32
    %c0_i32_1 = arith.constant 0 : i32
    return %c0_i32, %c0_i32_0 : i32, i32
  }
  func.func @transform_3(%arg0: i32) -> (i32, i32) {
    %c0_i32 = arith.constant 0 : i32
    %c0_i32_0 = arith.constant 0 : i32
    %c0_i32_1 = arith.constant 0 : i32
    return %c0_i32, %c0_i32_0 : i32, i32
  }
  func.func @transform_4(%arg0: i32) -> (i32, i32) {
    %c0_i32 = arith.constant 0 : i32
    %c0_i32_0 = arith.constant 0 : i32
    %c0_i32_1 = arith.constant 0 : i32
    return %c0_i32, %c0_i32_0 : i32, i32
  }
  func.func @transform_5(%arg0: i32) -> (i32, i32) {
    %c0_i32 = arith.constant 0 : i32
    %c0_i32_0 = arith.constant 0 : i32
    %c0_i32_1 = arith.constant 0 : i32
    return %c0_i32, %c0_i32_0 : i32, i32
  }
  func.func @transform_6(%arg0: i32) -> i32 {
    %c0_i32 = arith.constant 0 : i32
    %c0_i32_0 = arith.constant 0 : i32
    return %c0_i32 : i32
  }
  func.func @transform_7(%arg0: i32) -> (i32, i32) {
    %c0_i32 = arith.constant 0 : i32
    %c0_i32_0 = arith.constant 0 : i32
    return %c0_i32, %arg0 : i32, i32
  }
}

</mosaic_0001>

<llo_original>
// kernel: critic_forward.1
$region0: #{critic_forward.1}
  #allocation0 [shape = 'u32[]', space=smem, size = 0x4, offset = 0x4, fixed_abs, tag = 'smem constant byte address 0x4 - core index']
  #allocation1 [shape = 'u32[72,128]{1,0:T(1,128)}', space=vmem, size = 0x9000, scoped, tag = 'internal scratch']
  #allocation2 [shape = 'f32[1]{0:T(128)S(6)}', space=smem, size = 0x200, scoped, tag = 'scoped memory for critic_forward.1']
  %s0 = inlined_call_operand.vmem [shape: f32[4,128], index: 0, kind: input, shape index: {}]
  %s1 = inlined_call_operand.vmem [shape: f32[128,4], index: 1, kind: input, shape index: {}]
  %s2 = inlined_call_operand.vmem [shape: f32[128,1], index: 2, kind: input, shape index: {}]
  %s3 = inlined_call_operand.vmem [shape: bf16[128,128], index: 3, kind: input, shape index: {}]
  %s4 = inlined_call_operand.vmem [shape: f32[128,1], index: 4, kind: input, shape index: {}]
  %s5 = inlined_call_operand.vmem [shape: f32[128,1], index: 5, kind: input, shape index: {}]
  %s6 = inlined_call_operand.<no memory space> [shape: f32[1], index: 6, kind: input, shape index: {}]
  %s7 = inlined_call_operand.vmem [shape: f32[1,128], index: 7, kind: output, shape index: {}]
  %s8 = sld [smem:[#allocation0]]
  $region38: #{critic_forward.1} parent=0
    _
  %s10 = ssub.s32 1, %s8
  %s11 = scalar_select 0, %s10, %s8
  %12 = sst [smem:[#allocation2]] %s6
  // Predicated region
  $region2: #{critic_forward.1} parent=0 // pred_check
    _
  $region3: #{critic_forward.1} parent=0 // pred_check_branch
    %14 = sbr.rel (0) target = $region5
  $region4: #{critic_forward.1} parent=0 // pred_region
    _
  $region5: #{critic_forward.1} parent=0 // pred_fallthru
    _
  // Predicated region
  $region6: #{critic_forward.1} parent=0 // pred_check
    _
  $region7: #{critic_forward.1} parent=0 // pred_check_branch
    %16 = sbr.rel (0) target = $region9
  $region8: #{critic_forward.1} parent=0 // pred_region
    _
  $region9: #{critic_forward.1} parent=0 // pred_fallthru
    _
  // Predicated region
  $region10: #{critic_forward.1} parent=0 // pred_check
    _
  $region11: #{critic_forward.1} parent=0 // pred_check_branch
    %18 = sbr.rel (0) target = $region13
  $region12: #{critic_forward.1} parent=0 // pred_region
    _
  $region13: #{critic_forward.1} parent=0 // pred_fallthru
    _
  // Predicated region
  $region14: #{critic_forward.1} parent=0 // pred_check
    _
  $region15: #{critic_forward.1} parent=0 // pred_check_branch
    %20 = sbr.rel (0) target = $region17
  $region16: #{critic_forward.1} parent=0 // pred_region
    _
  $region17: #{critic_forward.1} parent=0 // pred_fallthru
    _
  // Predicated region
  $region18: #{critic_forward.1} parent=0 // pred_check
    _
  $region19: #{critic_forward.1} parent=0 // pred_check_branch
    %22 = sbr.rel (0) target = $region21
  $region20: #{critic_forward.1} parent=0 // pred_region
    _
  $region21: #{critic_forward.1} parent=0 // pred_fallthru
    _
  // Predicated region
  $region22: #{critic_forward.1} parent=0 // pred_check
    _
  $region23: #{critic_forward.1} parent=0 // pred_check_branch
    %24 = sbr.rel (0) target = $region25
  $region24: #{critic_forward.1} parent=0 // pred_region
    _
  $region25: #{critic_forward.1} parent=0 // pred_fallthru
    _
  // Predicated region
  $region26: #{critic_forward.1} parent=0 // pred_check
    _
  $region27: #{critic_forward.1} parent=0 // pred_check_branch
    %26 = sbr.rel (0) target = $region29
  $region28: #{critic_forward.1} parent=0 // pred_region
    _
  $region29: #{critic_forward.1} parent=0 // pred_fallthru
    _
  %v27 = vld [vmem:[%s0] sm:$0xf]
  %v28 = vld [vmem:[%s1] sm:$0xff]
  %v29 = vld [vmem:[%s1 + $0x8] sm:$0xff]
  %v30 = vld [vmem:[%s1 + $0x10] sm:$0xff]
  %v31 = vld [vmem:[%s1 + $0x18] sm:$0xff]
  %v32 = vld [vmem:[%s1 + $0x20] sm:$0xff]
  %v33 = vld [vmem:[%s1 + $0x28] sm:$0xff]
  %v34 = vld [vmem:[%s1 + $0x30] sm:$0xff]
  %v35 = vld [vmem:[%s1 + $0x38] sm:$0xff]
  %v36 = vld [vmem:[%s1 + $0x40] sm:$0xff]
  %v37 = vld [vmem:[%s1 + $0x48] sm:$0xff]
  %v38 = vld [vmem:[%s1 + $0x50] sm:$0xff]
  %v39 = vld [vmem:[%s1 + $0x58] sm:$0xff]
  %v40 = vld [vmem:[%s1 + $0x60] sm:$0xff]
  %v41 = vld [vmem:[%s1 + $0x68] sm:$0xff]
  %v42 = vld [vmem:[%s1 + $0x70] sm:$0xff]
  %v43 = vld [vmem:[%s1 + $0x78] sm:$0xff]
  %45 = vset.pattern.permute.xlu0 0
  %46 = vperm.xlu0 %45, %v28
  %v47 = vpop.permute.xlu0 %46
  %50 = vset.pattern.permute.xlu0 0
  %51 = vperm.xlu0 %50, %v29
  %v52 = vpop.permute.xlu0 %51
  %55 = vset.pattern.permute.xlu0 0
  %56 = vperm.xlu0 %55, %v30
  %v57 = vpop.permute.xlu0 %56
  %60 = vset.pattern.permute.xlu0 0
  %61 = vperm.xlu0 %60, %v31
  %v62 = vpop.permute.xlu0 %61
  %65 = vset.pattern.permute.xlu0 0
  %66 = vperm.xlu0 %65, %v32
  %v67 = vpop.permute.xlu0 %66
  %70 = vset.pattern.permute.xlu0 0
  %71 = vperm.xlu0 %70, %v33
  %v72 = vpop.permute.xlu0 %71
  %75 = vset.pattern.permute.xlu0 0
  %76 = vperm.xlu0 %75, %v34
  %v77 = vpop.permute.xlu0 %76
  %80 = vset.pattern.permute.xlu0 0
  %81 = vperm.xlu0 %80, %v35
  %v82 = vpop.permute.xlu0 %81
  %85 = vset.pattern.permute.xlu0 0
  %86 = vperm.xlu0 %85, %v36
  %v87 = vpop.permute.xlu0 %86
  %90 = vset.pattern.permute.xlu0 0
  %91 = vperm.xlu0 %90, %v37
  %v92 = vpop.permute.xlu0 %91
  %95 = vset.pattern.permute.xlu0 0
  %96 = vperm.xlu0 %95, %v38
  %v97 = vpop.permute.xlu0 %96
  %100 = vset.pattern.permute.xlu0 0
  %101 = vperm.xlu0 %100, %v39
  %v102 = vpop.permute.xlu0 %101
  %105 = vset.pattern.permute.xlu0 0
  %106 = vperm.xlu0 %105, %v40
  %v107 = vpop.permute.xlu0 %106
  %110 = vset.pattern.permute.xlu0 0
  %111 = vperm.xlu0 %110, %v41
  %v112 = vpop.permute.xlu0 %111
  %115 = vset.pattern.permute.xlu0 0
  %116 = vperm.xlu0 %115, %v42
  %v117 = vpop.permute.xlu0 %116
  %120 = vset.pattern.permute.xlu0 0
  %121 = vperm.xlu0 %120, %v43
  %v122 = vpop.permute.xlu0 %121
  %v124 = vperm.slane %v27, 0
  %v125 = vmul.f32 %v47, %v124
  %v126 = vmul.f32 %v52, %v124
  %v127 = vmul.f32 %v57, %v124
  %v128 = vmul.f32 %v62, %v124
  %v129 = vmul.f32 %v67, %v124
  %v130 = vmul.f32 %v72, %v124
  %v131 = vmul.f32 %v77, %v124
  %v132 = vmul.f32 %v82, %v124
  %v133 = vmul.f32 %v87, %v124
  %v134 = vmul.f32 %v92, %v124
  %v135 = vmul.f32 %v97, %v124
  %v136 = vmul.f32 %v102, %v124
  %v137 = vmul.f32 %v107, %v124
  %v138 = vmul.f32 %v112, %v124
  %v139 = vmul.f32 %v117, %v124
  %v140 = vmul.f32 %v122, %v124
  %141 = vset.pattern.permute.xlu0 1
  %142 = vperm.xlu0 %141, %v28
  %v143 = vpop.permute.xlu0 %142
  %145 = vset.pattern.permute.xlu0 1
  %146 = vperm.xlu0 %145, %v29
  %v147 = vpop.permute.xlu0 %146
  %149 = vset.pattern.permute.xlu0 1
  %150 = vperm.xlu0 %149, %v30
  %v151 = vpop.permute.xlu0 %150
  %153 = vset.pattern.permute.xlu0 1
  %154 = vperm.xlu0 %153, %v31
  %v155 = vpop.permute.xlu0 %154
  %157 = vset.pattern.permute.xlu0 1
  %158 = vperm.xlu0 %157, %v32
  %v159 = vpop.permute.xlu0 %158
  %161 = vset.pattern.permute.xlu0 1
  %162 = vperm.xlu0 %161, %v33
  %v163 = vpop.permute.xlu0 %162
  %165 = vset.pattern.permute.xlu0 1
  %166 = vperm.xlu0 %165, %v34
  %v167 = vpop.permute.xlu0 %166
  %169 = vset.pattern.permute.xlu0 1
  %170 = vperm.xlu0 %169, %v35
  %v171 = vpop.permute.xlu0 %170
  %173 = vset.pattern.permute.xlu0 1
  %174 = vperm.xlu0 %173, %v36
  %v175 = vpop.permute.xlu0 %174
  %177 = vset.pattern.permute.xlu0 1
  %178 = vperm.xlu0 %177, %v37
  %v179 = vpop.permute.xlu0 %178
  %181 = vset.pattern.permute.xlu0 1
  %182 = vperm.xlu0 %181, %v38
  %v183 = vpop.permute.xlu0 %182
  %185 = vset.pattern.permute.xlu0 1
  %186 = vperm.xlu0 %185, %v39
  %v187 = vpop.permute.xlu0 %186
  %189 = vset.pattern.permute.xlu0 1
  %190 = vperm.xlu0 %189, %v40
  %v191 = vpop.permute.xlu0 %190
  %193 = vset.pattern.permute.xlu0 1
  %194 = vperm.xlu0 %193, %v41
  %v195 = vpop.permute.xlu0 %194
  %197 = vset.pattern.permute.xlu0 1
  %198 = vperm.xlu0 %197, %v42
  %v199 = vpop.permute.xlu0 %198
  %201 = vset.pattern.permute.xlu0 1
  %202 = vperm.xlu0 %201, %v43
  %v203 = vpop.permute.xlu0 %202
  %v205 = vperm.slane %v27, 1
  %v206 = vmul.f32 %v143, %v205
  %v207 = vmul.f32 %v147, %v205
  %v208 = vmul.f32 %v151, %v205
  %v209 = vmul.f32 %v155, %v205
  %v210 = vmul.f32 %v159, %v205
  %v211 = vmul.f32 %v163, %v205
  %v212 = vmul.f32 %v167, %v205
  %v213 = vmul.f32 %v171, %v205
  %v214 = vmul.f32 %v175, %v205
  %v215 = vmul.f32 %v179, %v205
  %v216 = vmul.f32 %v183, %v205
  %v217 = vmul.f32 %v187, %v205
  %v218 = vmul.f32 %v191, %v205
  %v219 = vmul.f32 %v195, %v205
  %v220 = vmul.f32 %v199, %v205
  %v221 = vmul.f32 %v203, %v205
  %v222 = vadd.f32 %v125, %v206
  %v223 = vadd.f32 %v126, %v207
  %v224 = vadd.f32 %v127, %v208
  %v225 = vadd.f32 %v128, %v209
  %v226 = vadd.f32 %v129, %v210
  %v227 = vadd.f32 %v130, %v211
  %v228 = vadd.f32 %v131, %v212
  %v229 = vadd.f32 %v132, %v213
  %v230 = vadd.f32 %v133, %v214
  %v231 = vadd.f32 %v134, %v215
  %v232 = vadd.f32 %v135, %v216
  %v233 = vadd.f32 %v136, %v217
  %v234 = vadd.f32 %v137, %v218
  %v235 = vadd.f32 %v138, %v219
  %v236 = vadd.f32 %v139, %v220
  %v237 = vadd.f32 %v140, %v221
  %238 = vset.pattern.permute.xlu0 2
  %239 = vperm.xlu0 %238, %v28
  %v240 = vpop.permute.xlu0 %239
  %242 = vset.pattern.permute.xlu0 2
  %243 = vperm.xlu0 %242, %v29
  %v244 = vpop.permute.xlu0 %243
  %246 = vset.pattern.permute.xlu0 2
  %247 = vperm.xlu0 %246, %v30
  %v248 = vpop.permute.xlu0 %247
  %250 = vset.pattern.permute.xlu0 2
  %251 = vperm.xlu0 %250, %v31
  %v252 = vpop.permute.xlu0 %251
  %254 = vset.pattern.permute.xlu0 2
  %255 = vperm.xlu0 %254, %v32
  %v256 = vpop.permute.xlu0 %255
  %258 = vset.pattern.permute.xlu0 2
  %259 = vperm.xlu0 %258, %v33
  %v260 = vpop.permute.xlu0 %259
  %262 = vset.pattern.permute.xlu0 2
  %263 = vperm.xlu0 %262, %v34
  %v264 = vpop.permute.xlu0 %263
  %266 = vset.pattern.permute.xlu0 2
  %267 = vperm.xlu0 %266, %v35
  %v268 = vpop.permute.xlu0 %267
  %270 = vset.pattern.permute.xlu0 2
  %271 = vperm.xlu0 %270, %v36
  %v272 = vpop.permute.xlu0 %271
  %274 = vset.pattern.permute.xlu0 2
  %275 = vperm.xlu0 %274, %v37
  %v276 = vpop.permute.xlu0 %275
  %278 = vset.pattern.permute.xlu0 2
  %279 = vperm.xlu0 %278, %v38
  %v280 = vpop.permute.xlu0 %279
  %282 = vset.pattern.permute.xlu0 2
  %283 = vperm.xlu0 %282, %v39
  %v284 = vpop.permute.xlu0 %283
  %286 = vset.pattern.permute.xlu0 2
  %287 = vperm.xlu0 %286, %v40
  %v288 = vpop.permute.xlu0 %287
  %290 = vset.pattern.permute.xlu0 2
  %291 = vperm.xlu0 %290, %v41
  %v292 = vpop.permute.xlu0 %291
  %294 = vset.pattern.permute.xlu0 2
  %295 = vperm.xlu0 %294, %v42
  %v296 = vpop.permute.xlu0 %295
  %298 = vset.pattern.permute.xlu0 2
  %299 = vperm.xlu0 %298, %v43
  %v300 = vpop.permute.xlu0 %299
  %v302 = vperm.slane %v27, 2
  %v303 = vmul.f32 %v240, %v302
  %v304 = vmul.f32 %v244, %v302
  %v305 = vmul.f32 %v248, %v302
  %v306 = vmul.f32 %v252, %v302
  %v307 = vmul.f32 %v256, %v302
  %v308 = vmul.f32 %v260, %v302
  %v309 = vmul.f32 %v264, %v302
  %v310 = vmul.f32 %v268, %v302
  %v311 = vmul.f32 %v272, %v302
  %v312 = vmul.f32 %v276, %v302
  %v313 = vmul.f32 %v280, %v302
  %v314 = vmul.f32 %v284, %v302
  %v315 = vmul.f32 %v288, %v302
  %v316 = vmul.f32 %v292, %v302
  %v317 = vmul.f32 %v296, %v302
  %v318 = vmul.f32 %v300, %v302
  %v319 = vadd.f32 %v222, %v303
  %v320 = vadd.f32 %v223, %v304
  %v321 = vadd.f32 %v224, %v305
  %v322 = vadd.f32 %v225, %v306
  %v323 = vadd.f32 %v226, %v307
  %v324 = vadd.f32 %v227, %v308
  %v325 = vadd.f32 %v228, %v309
  %v326 = vadd.f32 %v229, %v310
  %v327 = vadd.f32 %v230, %v311
  %v328 = vadd.f32 %v231, %v312
  %v329 = vadd.f32 %v232, %v313
  %v330 = vadd.f32 %v233, %v314
  %v331 = vadd.f32 %v234, %v315
  %v332 = vadd.f32 %v235, %v316
  %v333 = vadd.f32 %v236, %v317
  %v334 = vadd.f32 %v237, %v318
  %335 = vset.pattern.permute.xlu0 3
  %336 = vperm.xlu0 %335, %v28
  %v337 = vpop.permute.xlu0 %336
  %339 = vset.pattern.permute.xlu0 3
  %340 = vperm.xlu0 %339, %v29
  %v341 = vpop.permute.xlu0 %340
  %343 = vset.pattern.permute.xlu0 3
  %344 = vperm.xlu0 %343, %v30
  %v345 = vpop.permute.xlu0 %344
  %347 = vset.pattern.permute.xlu0 3
  %348 = vperm.xlu0 %347, %v31
  %v349 = vpop.permute.xlu0 %348
  %351 = vset.pattern.permute.xlu0 3
  %352 = vperm.xlu0 %351, %v32
  %v353 = vpop.permute.xlu0 %352
  %355 = vset.pattern.permute.xlu0 3
  %356 = vperm.xlu0 %355, %v33
  %v357 = vpop.permute.xlu0 %356
  %359 = vset.pattern.permute.xlu0 3
  %360 = vperm.xlu0 %359, %v34
  %v361 = vpop.permute.xlu0 %360
  %363 = vset.pattern.permute.xlu0 3
  %364 = vperm.xlu0 %363, %v35
  %v365 = vpop.permute.xlu0 %364
  %367 = vset.pattern.permute.xlu0 3
  %368 = vperm.xlu0 %367, %v36
  %v369 = vpop.permute.xlu0 %368
  %371 = vset.pattern.permute.xlu0 3
  %372 = vperm.xlu0 %371, %v37
  %v373 = vpop.permute.xlu0 %372
  %375 = vset.pattern.permute.xlu0 3
  %376 = vperm.xlu0 %375, %v38
  %v377 = vpop.permute.xlu0 %376
  %379 = vset.pattern.permute.xlu0 3
  %380 = vperm.xlu0 %379, %v39
  %v381 = vpop.permute.xlu0 %380
  %383 = vset.pattern.permute.xlu0 3
  %384 = vperm.xlu0 %383, %v40
  %v385 = vpop.permute.xlu0 %384
  %387 = vset.pattern.permute.xlu0 3
  %388 = vperm.xlu0 %387, %v41
  %v389 = vpop.permute.xlu0 %388
  %391 = vset.pattern.permute.xlu0 3
  %392 = vperm.xlu0 %391, %v42
  %v393 = vpop.permute.xlu0 %392
  %395 = vset.pattern.permute.xlu0 3
  %396 = vperm.xlu0 %395, %v43
  %v397 = vpop.permute.xlu0 %396
  %v399 = vperm.slane %v27, 3
  %v400 = vmul.f32 %v337, %v399
  %v401 = vmul.f32 %v341, %v399
  %v402 = vmul.f32 %v345, %v399
  %v403 = vmul.f32 %v349, %v399
  %v404 = vmul.f32 %v353, %v399
  %v405 = vmul.f32 %v357, %v399
  %v406 = vmul.f32 %v361, %v399
  %v407 = vmul.f32 %v365, %v399
  %v408 = vmul.f32 %v369, %v399
  %v409 = vmul.f32 %v373, %v399
  %v410 = vmul.f32 %v377, %v399
  %v411 = vmul.f32 %v381, %v399
  %v412 = vmul.f32 %v385, %v399
  %v413 = vmul.f32 %v389, %v399
  %v414 = vmul.f32 %v393, %v399
  %v415 = vmul.f32 %v397, %v399
  %v416 = vadd.f32 %v319, %v400
  %v417 = vadd.f32 %v320, %v401
  %v418 = vadd.f32 %v321, %v402
  %v419 = vadd.f32 %v322, %v403
  %v420 = vadd.f32 %v323, %v404
  %v421 = vadd.f32 %v324, %v405
  %v422 = vadd.f32 %v325, %v406
  %v423 = vadd.f32 %v326, %v407
  %v424 = vadd.f32 %v327, %v408
  %v425 = vadd.f32 %v328, %v409
  %v426 = vadd.f32 %v329, %v410
  %v427 = vadd.f32 %v330, %v411
  %v428 = vadd.f32 %v331, %v412
  %v429 = vadd.f32 %v332, %v413
  %v430 = vadd.f32 %v333, %v414
  %v431 = vadd.f32 %v334, %v415
  %v432 = vld [vmem:[%s2] sm:$0xff]
  %v433 = vld [vmem:[%s2 + $0x8] sm:$0xff]
  %v434 = vld [vmem:[%s2 + $0x10] sm:$0xff]
  %v435 = vld [vmem:[%s2 + $0x18] sm:$0xff]
  %v436 = vld [vmem:[%s2 + $0x20] sm:$0xff]
  %v437 = vld [vmem:[%s2 + $0x28] sm:$0xff]
  %v438 = vld [vmem:[%s2 + $0x30] sm:$0xff]
  %v439 = vld [vmem:[%s2 + $0x38] sm:$0xff]
  %v440 = vld [vmem:[%s2 + $0x40] sm:$0xff]
  %v441 = vld [vmem:[%s2 + $0x48] sm:$0xff]
  %v442 = vld [vmem:[%s2 + $0x50] sm:$0xff]
  %v443 = vld [vmem:[%s2 + $0x58] sm:$0xff]
  %v444 = vld [vmem:[%s2 + $0x60] sm:$0xff]
  %v445 = vld [vmem:[%s2 + $0x68] sm:$0xff]
  %v446 = vld [vmem:[%s2 + $0x70] sm:$0xff]
  %v447 = vld [vmem:[%s2 + $0x78] sm:$0xff]
  %449 = vset.pattern.permute.xlu0 0
  %450 = vperm.xlu0 %449, %v432
  %v451 = vpop.permute.xlu0 %450
  %454 = vset.pattern.permute.xlu0 0
  %455 = vperm.xlu0 %454, %v433
  %v456 = vpop.permute.xlu0 %455
  %459 = vset.pattern.permute.xlu0 0
  %460 = vperm.xlu0 %459, %v434
  %v461 = vpop.permute.xlu0 %460
  %464 = vset.pattern.permute.xlu0 0
  %465 = vperm.xlu0 %464, %v435
  %v466 = vpop.permute.xlu0 %465
  %469 = vset.pattern.permute.xlu0 0
  %470 = vperm.xlu0 %469, %v436
  %v471 = vpop.permute.xlu0 %470
  %474 = vset.pattern.permute.xlu0 0
  %475 = vperm.xlu0 %474, %v437
  %v476 = vpop.permute.xlu0 %475
  %479 = vset.pattern.permute.xlu0 0
  %480 = vperm.xlu0 %479, %v438
  %v481 = vpop.permute.xlu0 %480
  %484 = vset.pattern.permute.xlu0 0
  %485 = vperm.xlu0 %484, %v439
  %v486 = vpop.permute.xlu0 %485
  %489 = vset.pattern.permute.xlu0 0
  %490 = vperm.xlu0 %489, %v440
  %v491 = vpop.permute.xlu0 %490
  %494 = vset.pattern.permute.xlu0 0
  %495 = vperm.xlu0 %494, %v441
  %v496 = vpop.permute.xlu0 %495
  %499 = vset.pattern.permute.xlu0 0
  %500 = vperm.xlu0 %499, %v442
  %v501 = vpop.permute.xlu0 %500
  %504 = vset.pattern.permute.xlu0 0
  %505 = vperm.xlu0 %504, %v443
  %v506 = vpop.permute.xlu0 %505
  %509 = vset.pattern.permute.xlu0 0
  %510 = vperm.xlu0 %509, %v444
  %v511 = vpop.permute.xlu0 %510
  %514 = vset.pattern.permute.xlu0 0
  %515 = vperm.xlu0 %514, %v445
  %v516 = vpop.permute.xlu0 %515
  %519 = vset.pattern.permute.xlu0 0
  %520 = vperm.xlu0 %519, %v446
  %v521 = vpop.permute.xlu0 %520
  %524 = vset.pattern.permute.xlu0 0
  %525 = vperm.xlu0 %524, %v447
  %v526 = vpop.permute.xlu0 %525
  %v528 = vadd.f32 %v416, %v451
  %v529 = vadd.f32 %v417, %v456
  %v530 = vadd.f32 %v418, %v461
  %v531 = vadd.f32 %v419, %v466
  %v532 = vadd.f32 %v420, %v471
  %v533 = vadd.f32 %v421, %v476
  %v534 = vadd.f32 %v422, %v481
  %v535 = vadd.f32 %v423, %v486
  %v536 = vadd.f32 %v424, %v491
  %v537 = vadd.f32 %v425, %v496
  %v538 = vadd.f32 %v426, %v501
  %v539 = vadd.f32 %v427, %v506
  %v540 = vadd.f32 %v428, %v511
  %v541 = vadd.f32 %v429, %v516
  %v542 = vadd.f32 %v430, %v521
  %v543 = vadd.f32 %v431, %v526
  %v544 = vmax.f32 %v528, 0.0
  %v545 = vmax.f32 %v529, 0.0
  %v546 = vmax.f32 %v530, 0.0
  %v547 = vmax.f32 %v531, 0.0
  %v548 = vmax.f32 %v532, 0.0
  %v549 = vmax.f32 %v533, 0.0
  %v550 = vmax.f32 %v534, 0.0
  %v551 = vmax.f32 %v535, 0.0
  %v552 = vmax.f32 %v536, 0.0
  %v553 = vmax.f32 %v537, 0.0
  %v554 = vmax.f32 %v538, 0.0
  %v555 = vmax.f32 %v539, 0.0
  %v556 = vmax.f32 %v540, 0.0
  %v557 = vmax.f32 %v541, 0.0
  %v558 = vmax.f32 %v542, 0.0
  %v559 = vmax.f32 %v543, 0.0
  %v560 = vld [vmem:[%s3] sm:$0xf]
  %v561 = vld [vmem:[%s3 + $0x4] sm:$0xf]
  %v562 = vld [vmem:[%s3 + $0x8] sm:$0xf]
  %v563 = vld [vmem:[%s3 + $0xc] sm:$0xf]
  %v564 = vld [vmem:[%s3 + $0x10] sm:$0xf]
  %v565 = vld [vmem:[%s3 + $0x14] sm:$0xf]
  %v566 = vld [vmem:[%s3 + $0x18] sm:$0xf]
  %v567 = vld [vmem:[%s3 + $0x1c] sm:$0xf]
  %v568 = vld [vmem:[%s3 + $0x20] sm:$0xf]
  %v569 = vld [vmem:[%s3 + $0x24] sm:$0xf]
  %v570 = vld [vmem:[%s3 + $0x28] sm:$0xf]
  %v571 = vld [vmem:[%s3 + $0x2c] sm:$0xf]
  %v572 = vld [vmem:[%s3 + $0x30] sm:$0xf]
  %v573 = vld [vmem:[%s3 + $0x34] sm:$0xf]
  %v574 = vld [vmem:[%s3 + $0x38] sm:$0xf]
  %v575 = vld [vmem:[%s3 + $0x3c] sm:$0xf]
  %v576 = vpack.c.bf16 %v545, %v544
  %v577 = vpack.c.bf16 %v547, %v546
  %v578 = vpack.c.bf16 %v549, %v548
  %v579 = vpack.c.bf16 %v551, %v550
  %v580 = vpack.c.bf16 %v553, %v552
  %v581 = vpack.c.bf16 %v555, %v554
  %v582 = vpack.c.bf16 %v557, %v556
  %v583 = vpack.c.bf16 %v559, %v558
  %v584 = vld [vmem:[%s4] sm:$0xff]
  %v585 = vld [vmem:[%s4 + $0x8] sm:$0xff]
  %v586 = vld [vmem:[%s4 + $0x10] sm:$0xff]
  %v587 = vld [vmem:[%s4 + $0x18] sm:$0xff]
  %v588 = vld [vmem:[%s4 + $0x20] sm:$0xff]
  %v589 = vld [vmem:[%s4 + $0x28] sm:$0xff]
  %v590 = vld [vmem:[%s4 + $0x30] sm:$0xff]
  %v591 = vld [vmem:[%s4 + $0x38] sm:$0xff]
  %v592 = vld [vmem:[%s4 + $0x40] sm:$0xff]
  %v593 = vld [vmem:[%s4 + $0x48] sm:$0xff]
  %v594 = vld [vmem:[%s4 + $0x50] sm:$0xff]
  %v595 = vld [vmem:[%s4 + $0x58] sm:$0xff]
  %v596 = vld [vmem:[%s4 + $0x60] sm:$0xff]
  %v597 = vld [vmem:[%s4 + $0x68] sm:$0xff]
  %v598 = vld [vmem:[%s4 + $0x70] sm:$0xff]
  %v599 = vld [vmem:[%s4 + $0x78] sm:$0xff]
  %601 = vset.pattern.permute.xlu0 0
  %602 = vperm.xlu0 %601, %v584
  %v603 = vpop.permute.xlu0 %602
  %606 = vset.pattern.permute.xlu0 0
  %607 = vperm.xlu0 %606, %v585
  %v608 = vpop.permute.xlu0 %607
  %611 = vset.pattern.permute.xlu0 0
  %612 = vperm.xlu0 %611, %v586
  %v613 = vpop.permute.xlu0 %612
  %616 = vset.pattern.permute.xlu0 0
  %617 = vperm.xlu0 %616, %v587
  %v618 = vpop.permute.xlu0 %617
  %621 = vset.pattern.permute.xlu0 0
  %622 = vperm.xlu0 %621, %v588
  %v623 = vpop.permute.xlu0 %622
  %626 = vset.pattern.permute.xlu0 0
  %627 = vperm.xlu0 %626, %v589
  %v628 = vpop.permute.xlu0 %627
  %631 = vset.pattern.permute.xlu0 0
  %632 = vperm.xlu0 %631, %v590
  %v633 = vpop.permute.xlu0 %632
  %636 = vset.pattern.permute.xlu0 0
  %637 = vperm.xlu0 %636, %v591
  %v638 = vpop.permute.xlu0 %637
  %641 = vset.pattern.permute.xlu0 0
  %642 = vperm.xlu0 %641, %v592
  %v643 = vpop.permute.xlu0 %642
  %646 = vset.pattern.permute.xlu0 0
  %647 = vperm.xlu0 %646, %v593
  %v648 = vpop.permute.xlu0 %647
  %651 = vset.pattern.permute.xlu0 0
  %652 = vperm.xlu0 %651, %v594
  %v653 = vpop.permute.xlu0 %652
  %656 = vset.pattern.permute.xlu0 0
  %657 = vperm.xlu0 %656, %v595
  %v658 = vpop.permute.xlu0 %657
  %661 = vset.pattern.permute.xlu0 0
  %662 = vperm.xlu0 %661, %v596
  %v663 = vpop.permute.xlu0 %662
  %666 = vset.pattern.permute.xlu0 0
  %667 = vperm.xlu0 %666, %v597
  %v668 = vpop.permute.xlu0 %667
  %671 = vset.pattern.permute.xlu0 0
  %672 = vperm.xlu0 %671, %v598
  %v673 = vpop.permute.xlu0 %672
  %676 = vset.pattern.permute.xlu0 0
  %677 = vperm.xlu0 %676, %v599
  %v678 = vpop.permute.xlu0 %677
  %v696 = vunpack.c.l.b16 %v560
  %v697 = vunpack.c.l.b16 %v561
  %v698 = vunpack.c.l.b16 %v562
  %v699 = vunpack.c.l.b16 %v563
  %v700 = vunpack.c.l.b16 %v564
  %v701 = vunpack.c.l.b16 %v565
  %v702 = vunpack.c.l.b16 %v566
  %v703 = vunpack.c.l.b16 %v567
  %v704 = vunpack.c.l.b16 %v568
  %v705 = vunpack.c.l.b16 %v569
  %v706 = vunpack.c.l.b16 %v570
  %v707 = vunpack.c.l.b16 %v571
  %v708 = vunpack.c.l.b16 %v572
  %v709 = vunpack.c.l.b16 %v573
  %v710 = vunpack.c.l.b16 %v574
  %v711 = vunpack.c.l.b16 %v575
  %v712 = vpack.c.b16 %v697, %v696
  %v713 = vpack.c.b16 %v699, %v698
  %v714 = vpack.c.b16 %v701, %v700
  %v715 = vpack.c.b16 %v703, %v702
  %v716 = vpack.c.b16 %v705, %v704
  %v717 = vpack.c.b16 %v707, %v706
  %v718 = vpack.c.b16 %v709, %v708
  %v719 = vpack.c.b16 %v711, %v710
  %728 = vmatpush.bf16.msra.mxu0 %v583
  %729 = vmatpush.bf16.msra.mxu0 %v582
  %730 = vmatpush.bf16.msra.mxu0 %v581
  %731 = vmatpush.bf16.msra.mxu0 %v580
  %732 = vmatpush.bf16.msra.mxu0 %v579
  %733 = vmatpush.bf16.msra.mxu0 %v578
  %734 = vmatpush.bf16.msra.mxu0 %v577
  %735 = vmatpush.bf16.msra.mxu0 %v576
  %736 = vmatmul.bf16.gmra.mxu0 %v712
  %v737 = vpop.f32.mrf.mxu0
  %v738 = vadd.f32 %v603, %v737
  %v739 = vpop.f32.mrf.mxu0
  %v740 = vadd.f32 %v608, %v739
  %741 = vmatmul.bf16.gmra.mxu0 %v713
  %v742 = vpop.f32.mrf.mxu0
  %v743 = vadd.f32 %v613, %v742
  %v744 = vpop.f32.mrf.mxu0
  %v745 = vadd.f32 %v618, %v744
  %746 = vmatmul.bf16.gmra.mxu0 %v714
  %v747 = vpop.f32.mrf.mxu0
  %v748 = vadd.f32 %v623, %v747
  %v749 = vpop.f32.mrf.mxu0
  %v750 = vadd.f32 %v628, %v749
  %751 = vmatmul.bf16.gmra.mxu0 %v715
  %v752 = vpop.f32.mrf.mxu0
  %v753 = vadd.f32 %v633, %v752
  %v754 = vpop.f32.mrf.mxu0
  %v755 = vadd.f32 %v638, %v754
  %756 = vmatmul.bf16.gmra.mxu0 %v716
  %v757 = vpop.f32.mrf.mxu0
  %v758 = vadd.f32 %v643, %v757
  %v759 = vpop.f32.mrf.mxu0
  %v760 = vadd.f32 %v648, %v759
  %761 = vmatmul.bf16.gmra.mxu0 %v717
  %v762 = vpop.f32.mrf.mxu0
  %v763 = vadd.f32 %v653, %v762
  %v764 = vpop.f32.mrf.mxu0
  %v765 = vadd.f32 %v658, %v764
  %766 = vmatmul.bf16.gmra.mxu0 %v718
  %v767 = vpop.f32.mrf.mxu0
  %v768 = vadd.f32 %v663, %v767
  %v769 = vpop.f32.mrf.mxu0
  %v770 = vadd.f32 %v668, %v769
  %771 = vmatmul.bf16.gmra.mxu0 %v719
  %v772 = vpop.f32.mrf.mxu0
  %v773 = vadd.f32 %v673, %v772
  %v774 = vpop.f32.mrf.mxu0
  %v775 = vadd.f32 %v678, %v774
  %776 = vdwg.mxu0
  %v777 = vmax.f32 %v738, 0.0
  %v778 = vmax.f32 %v740, 0.0
  %v779 = vmax.f32 %v743, 0.0
  %v780 = vmax.f32 %v745, 0.0
  %v781 = vmax.f32 %v748, 0.0
  %v782 = vmax.f32 %v750, 0.0
  %v783 = vmax.f32 %v753, 0.0
  %v784 = vmax.f32 %v755, 0.0
  %v785 = vmax.f32 %v758, 0.0
  %v786 = vmax.f32 %v760, 0.0
  %v787 = vmax.f32 %v763, 0.0
  %v788 = vmax.f32 %v765, 0.0
  %v789 = vmax.f32 %v768, 0.0
  %v790 = vmax.f32 %v770, 0.0
  %v791 = vmax.f32 %v773, 0.0
  %v792 = vmax.f32 %v775, 0.0
  %v793 = vld [vmem:[%s5] sm:$0xff]
  %v794 = vld [vmem:[%s5 + $0x8] sm:$0xff]
  %v795 = vld [vmem:[%s5 + $0x10] sm:$0xff]
  %v796 = vld [vmem:[%s5 + $0x18] sm:$0xff]
  %v797 = vld [vmem:[%s5 + $0x20] sm:$0xff]
  %v798 = vld [vmem:[%s5 + $0x28] sm:$0xff]
  %v799 = vld [vmem:[%s5 + $0x30] sm:$0xff]
  %v800 = vld [vmem:[%s5 + $0x38] sm:$0xff]
  %v801 = vld [vmem:[%s5 + $0x40] sm:$0xff]
  %v802 = vld [vmem:[%s5 + $0x48] sm:$0xff]
  %v803 = vld [vmem:[%s5 + $0x50] sm:$0xff]
  %v804 = vld [vmem:[%s5 + $0x58] sm:$0xff]
  %v805 = vld [vmem:[%s5 + $0x60] sm:$0xff]
  %v806 = vld [vmem:[%s5 + $0x68] sm:$0xff]
  %v807 = vld [vmem:[%s5 + $0x70] sm:$0xff]
  %v808 = vld [vmem:[%s5 + $0x78] sm:$0xff]
  %810 = vset.pattern.permute.xlu0 0
  %811 = vperm.xlu0 %810, %v793
  %v812 = vpop.permute.xlu0 %811
  %815 = vset.pattern.permute.xlu0 0
  %816 = vperm.xlu0 %815, %v794
  %v817 = vpop.permute.xlu0 %816
  %820 = vset.pattern.permute.xlu0 0
  %821 = vperm.xlu0 %820, %v795
  %v822 = vpop.permute.xlu0 %821
  %825 = vset.pattern.permute.xlu0 0
  %826 = vperm.xlu0 %825, %v796
  %v827 = vpop.permute.xlu0 %826
  %830 = vset.pattern.permute.xlu0 0
  %831 = vperm.xlu0 %830, %v797
  %v832 = vpop.permute.xlu0 %831
  %835 = vset.pattern.permute.xlu0 0
  %836 = vperm.xlu0 %835, %v798
  %v837 = vpop.permute.xlu0 %836
  %840 = vset.pattern.permute.xlu0 0
  %841 = vperm.xlu0 %840, %v799
  %v842 = vpop.permute.xlu0 %841
  %845 = vset.pattern.permute.xlu0 0
  %846 = vperm.xlu0 %845, %v800
  %v847 = vpop.permute.xlu0 %846
  %850 = vset.pattern.permute.xlu0 0
  %851 = vperm.xlu0 %850, %v801
  %v852 = vpop.permute.xlu0 %851
  %855 = vset.pattern.permute.xlu0 0
  %856 = vperm.xlu0 %855, %v802
  %v857 = vpop.permute.xlu0 %856
  %860 = vset.pattern.permute.xlu0 0
  %861 = vperm.xlu0 %860, %v803
  %v862 = vpop.permute.xlu0 %861
  %865 = vset.pattern.permute.xlu0 0
  %866 = vperm.xlu0 %865, %v804
  %v867 = vpop.permute.xlu0 %866
  %870 = vset.pattern.permute.xlu0 0
  %871 = vperm.xlu0 %870, %v805
  %v872 = vpop.permute.xlu0 %871
  %875 = vset.pattern.permute.xlu0 0
  %876 = vperm.xlu0 %875, %v806
  %v877 = vpop.permute.xlu0 %876
  %880 = vset.pattern.permute.xlu0 0
  %881 = vperm.xlu0 %880, %v807
  %v882 = vpop.permute.xlu0 %881
  %885 = vset.pattern.permute.xlu0 0
  %886 = vperm.xlu0 %885, %v808
  %v887 = vpop.permute.xlu0 %886
  %v889 = vmul.f32 %v777, %v812
  %v890 = vmul.f32 %v778, %v817
  %v891 = vmul.f32 %v779, %v822
  %v892 = vmul.f32 %v780, %v827
  %v893 = vmul.f32 %v781, %v832
  %v894 = vmul.f32 %v782, %v837
  %v895 = vmul.f32 %v783, %v842
  %v896 = vmul.f32 %v784, %v847
  %v897 = vmul.f32 %v785, %v852
  %v898 = vmul.f32 %v786, %v857
  %v899 = vmul.f32 %v787, %v862
  %v900 = vmul.f32 %v788, %v867
  %v901 = vmul.f32 %v789, %v872
  %v902 = vmul.f32 %v790, %v877
  %v903 = vmul.f32 %v791, %v882
  %v904 = vmul.f32 %v792, %v887
  %v905 = vadd.f32 %v889, %v890
  %v906 = vadd.f32 %v905, %v891
  %v907 = vadd.f32 %v906, %v892
  %v908 = vadd.f32 %v907, %v893
  %v909 = vadd.f32 %v908, %v894
  %v910 = vadd.f32 %v909, %v895
  %v911 = vadd.f32 %v910, %v896
  %v912 = vadd.f32 %v911, %v897
  %v913 = vadd.f32 %v912, %v898
  %v914 = vadd.f32 %v913, %v899
  %v915 = vadd.f32 %v914, %v900
  %v916 = vadd.f32 %v915, %v901
  %v917 = vadd.f32 %v916, %v902
  %v918 = vadd.f32 %v917, %v903
  %v919 = vadd.f32 %v918, %v904
  %v920 = vrot.slane %v919, 4
  %v921 = vadd.f32 %v919, %v920
  %v922 = vrot.slane %v921, 2
  %v923 = vadd.f32 %v921, %v922
  %v924 = vrot.slane %v923, 1
  %v925 = vadd.f32 %v923, %v924
  %s926 = sld [smem:[#allocation2]]
  %v927 = vstv %s926
  %v928 = vadd.f32 %v925, %v927
  %929 = vst [vmem:[%s7] sm:$0x1] %v928
  // Predicated region
  $region30: #{critic_forward.1} parent=0 // pred_check
    _
  $region31: #{critic_forward.1} parent=0 // pred_check_branch
    %931 = sbr.rel (0) target = $region33
  $region32: #{critic_forward.1} parent=0 // pred_region
    _
  $region33: #{critic_forward.1} parent=0 // pred_fallthru
    _
  // Predicated region
  $region34: #{critic_forward.1} parent=0 // pred_check
    _
  $region35: #{critic_forward.1} parent=0 // pred_check_branch
    %933 = sbr.rel (0) target = $region37
  $region36: #{critic_forward.1} parent=0 // pred_region
    _
  $region37: #{critic_forward.1} parent=0 // pred_fallthru
    _

</llo_original>
